<compile_context>
chip_gen: v7x
topology: tpu7x:2x2x1
jax: 0.10.0
libtpu: 0.0.40
codegen_flags: <defaults>
</compile_context>

<pallas_src>
import math

import jax
import jax.numpy as jnp
from jax.experimental import pallas as pl
from jax.experimental.pallas import tpu as pltpu


_MAX_ROW_TILE = 256     # node-dimension tile; fits comfortably in every generation's VMEM


def _round_up(x, m):
    return ((x + m - 1) // m) * m


def _padded_rows(n):
    # <=256 rows: pad to a multiple of 8 and use the full extent as the tile
    # (full-dim blocks are exempt from the (8,128) divisibility rule);
    # >256 rows: pad to a multiple of the 256-row tile.
    if n <= _MAX_ROW_TILE:
        return _round_up(n, 8)
    return _round_up(n, _MAX_ROW_TILE)


def _row_tile(n_pad):
    return n_pad if n_pad <= _MAX_ROW_TILE else _MAX_ROW_TILE


def _pad_rows(x, n_pad):
    n = x.shape[0]
    if n == n_pad:
        return x
    pad = [(0, n_pad - n)] + [(0, 0)] * (x.ndim - 1)
    return jnp.pad(x, pad)


def _vmem_limit_bytes():
    # Raise the scoped-VMEM limit, but stay within 3/4 of physical VMEM on every
    # generation (v7x has only 64 MiB per TensorCore).
    try:
        cap = int(pltpu.get_tpu_info().vmem_capacity_bytes)
        return int(min(cap * 3 // 4, 100 * 1024 * 1024))
    except Exception:
        return 32 * 1024 * 1024


def _block_diag(mats):
    """(H, dk, dk) -> (H*dk, H*dk) block-diagonal, head-major feature layout."""
    h, dk, _ = mats.shape
    eye = jnp.eye(h, dtype=mats.dtype)
    return jnp.einsum("hg,hij->higj", eye, mats).reshape(h * dk, h * dk)


# ----------------------------------------------------------------------------
# Kernel 1: fused K/Q/V projections for one node type (row-tiled, bf16 MXU).
# ----------------------------------------------------------------------------
def _kqv_kernel(x_ref, wk_ref, wq_ref, wv_ref, bk_ref, bq_ref, bv_ref,
                k_ref, q_ref, v_ref):
    x = x_ref[...]                                                  # (TN, in) bf16
    k_ref[...] = (jnp.dot(x, wk_ref[...], preferred_element_type=jnp.float32)
                  + bk_ref[...]).astype(k_ref.dtype)
    q_ref[...] = (jnp.dot(x, wq_ref[...], preferred_element_type=jnp.float32)
                  + bq_ref[...]).astype(q_ref.dtype)
    v_ref[...] = (jnp.dot(x, wv_ref[...], preferred_element_type=jnp.float32)
                  + bv_ref[...]).astype(v_ref.dtype)


def _kqv(x_pad, wk, wq, wv, bk, bq, bv, out_dim, vmem_limit):
    n_pad, in_dim = x_pad.shape
    tn = _row_tile(n_pad)
    grid = (n_pad // tn,)
    row_in = pl.BlockSpec((tn, in_dim), lambda i: (i, 0))
    w_spec = pl.BlockSpec((in_dim, out_dim), lambda i: (0, 0))      # resident weights
    b_spec = pl.BlockSpec((1, out_dim), lambda i: (0, 0))
    row_out = pl.BlockSpec((tn, out_dim), lambda i: (i, 0))
    shp = jax.ShapeDtypeStruct((n_pad, out_dim), jnp.bfloat16)
    return pl.pallas_call(
        _kqv_kernel,
        out_shape=(shp, shp, shp),
        grid_spec=pltpu.PrefetchScalarGridSpec(
            num_scalar_prefetch=0,
            grid=grid,
            in_specs=[row_in, w_spec, w_spec, w_spec, b_spec, b_spec, b_spec],
            out_specs=(row_out, row_out, row_out),
        ),
        compiler_params=pltpu.CompilerParams(
            dimension_semantics=("parallel",),
            vmem_limit_bytes=vmem_limit),
    )(x_pad, wk, wq, wv, bk, bq, bv)


# ----------------------------------------------------------------------------
# Kernel 2: all relations sharing one destination type, flash-attention style.
#   grid = (dst_tiles, relations, src_tiles); output block resident across
#   (relation, src) and used as the cross-relation accumulator.
#   q: (Nd, D) bf16   k/v: (R, Ns, D) bf16   att/msg: (R, D, D) bf16 block-diag
#   adj: (R, Nd, Ns) int8                    out: (Nd, D) f32
# ----------------------------------------------------------------------------
def _make_relation_kernel(n_heads, d_k):
    def kernel(q_ref, k_ref, v_ref, att_ref, msg_ref, adj_ref, o_ref,
               m_sc, l_sc, pacc_sc):
        r = pl.program_id(1)
        s = pl.program_id(2)
        n_src = pl.num_programs(2)

        @pl.when(jnp.logical_and(r == 0, s == 0))
        def _init_out():
            o_ref[...] = jnp.zeros(o_ref.shape, o_ref.dtype)

        @pl.when(s == 0)
        def _init_softmax():
            m_sc[...] = jnp.full(m_sc.shape, -jnp.inf, m_sc.dtype)
            l_sc[...] = jnp.zeros(l_sc.shape, l_sc.dtype)
            pacc_sc[...] = jnp.zeros(pacc_sc.shape, pacc_sc.dtype)

        q = q_ref[...]                                              # (TQ, D) bf16
        k = k_ref[0]                                                # (TK, D) bf16
        v = v_ref[0]                                                # (TK, D) bf16
        # Head-batched D-wide MXU contractions (relation_pri/sqrt_dk folded into att).
        kh = jnp.dot(k, att_ref[0],
                     preferred_element_type=jnp.float32).astype(jnp.bfloat16)
        vh = jnp.dot(v, msg_ref[0],
                     preferred_element_type=jnp.float32).astype(jnp.bfloat16)
        mask = adj_ref[0].astype(jnp.float32) > 0.0                 # (TQ, TK)

        tq = q.shape[0]
        pv_parts = []
        alpha_parts = []
        for h in range(n_heads):
            lo = h * d_k
            q_h = jax.lax.slice_in_dim(q, lo, lo + d_k, axis=1)
            kh_h = jax.lax.slice_in_dim(kh, lo, lo + d_k, axis=1)
            vh_h = jax.lax.slice_in_dim(vh, lo, lo + d_k, axis=1)
            logits = jax.lax.dot_general(q_h, kh_h, (((1,), (1,)), ((), ())),
                                         preferred_element_type=jnp.float32)
            logits = jnp.where(mask, logits, -jnp.inf)              # single mask mechanism
            m_prev = m_sc[h]                                        # (TQ, 1)
            m_new = jnp.maximum(m_prev, jnp.max(logits, axis=-1, keepdims=True))
            m_safe = jnp.maximum(m_new, jnp.float32(-1e30))         # edgeless rows -> exp(-inf)=0
            alpha = jnp.exp(m_prev - m_safe)                        # (TQ, 1)
            p = jnp.exp(logits - m_safe)                            # (TQ, TK) f32
            l_sc[h] = alpha * l_sc[h] + jnp.sum(p, axis=-1, keepdims=True)
            m_sc[h] = m_new
            pv_parts.append(jnp.dot(p.astype(jnp.bfloat16), vh_h,
                                    preferred_element_type=jnp.float32))
            alpha_parts.append(jnp.broadcast_to(alpha, (tq, d_k)))
        pv = jnp.concatenate(pv_parts, axis=1)                      # (TQ, D) lane-dense
        alpha_full = jnp.concatenate(alpha_parts, axis=1)           # (TQ, D)
        pacc_sc[...] = alpha_full * pacc_sc[...] + pv

        @pl.when(s == n_src - 1)
        def _finalize_relation():
            inv_parts = []
            for h in range(n_heads):
                l = l_sc[h]                                         # (TQ, 1)
                l_safe = jnp.where(l > 0.0, l, 1.0)                 # edgeless dst -> pacc is 0
                inv = pl.reciprocal(l_safe, approx=True)
                inv_parts.append(jnp.broadcast_to(inv, (tq, d_k)))
            inv_full = jnp.concatenate(inv_parts, axis=1)           # (TQ, D)
            o_ref[...] = o_ref[...] + pacc_sc[...] * inv_full       # cross_reducer='sum'

    return kernel


def _relation_attn_group(q_pad, k_stack, v_stack, att_bd, msg_bd, adj_stack,
                         n_heads, d_k, vmem_limit):
    nd_pad, out_dim = q_pad.shape
    n_rel, ns_pad, _ = k_stack.shape
    tq = _row_tile(nd_pad)
    tk = _row_tile(ns_pad)
    grid = (nd_pad // tq, n_rel, ns_pad // tk)
    kernel = _make_relation_kernel(n_heads, d_k)
    return pl.pallas_call(
        kernel,
        out_shape=jax.ShapeDtypeStruct((nd_pad, out_dim), jnp.float32),
        grid_spec=pltpu.PrefetchScalarGridSpec(
            num_scalar_prefetch=0,
            grid=grid,
            in_specs=[
                pl.BlockSpec((tq, out_dim), lambda i, r, s: (i, 0)),
                pl.BlockSpec((1, tk, out_dim), lambda i, r, s: (r, s, 0)),
                pl.BlockSpec((1, tk, out_dim), lambda i, r, s: (r, s, 0)),
                pl.BlockSpec((1, out_dim, out_dim), lambda i, r, s: (r, 0, 0)),
                pl.BlockSpec((1, out_dim, out_dim), lambda i, r, s: (r, 0, 0)),
                pl.BlockSpec((1, tq, tk), lambda i, r, s: (r, i, s)),
            ],
            out_specs=pl.BlockSpec((tq, out_dim), lambda i, r, s: (i, 0)),
            scratch_shapes=[
                pltpu.VMEM((n_heads, tq, 1), jnp.float32),          # running max per head
                pltpu.VMEM((n_heads, tq, 1), jnp.float32),          # running denom per head
                pltpu.VMEM((tq, out_dim), jnp.float32),             # per-relation partial sum
            ],
        ),
        compiler_params=pltpu.CompilerParams(
            dimension_semantics=("parallel", "arbitrary", "arbitrary"),
            vmem_limit_bytes=vmem_limit),
    )(q_pad, k_stack, v_stack, att_bd, msg_bd, adj_stack)


# ----------------------------------------------------------------------------
# Kernel 3: relu -> a_linear -> residual -> LayerNorm -> PositionwiseFeedForward.
# ----------------------------------------------------------------------------
def _post_ffd_kernel(agg_ref, h_ref, wa_ref, ba_ref, g1_ref, be1_ref,
                     g2_ref, be2_ref, w1_ref, bf1_ref, w2_ref, bf2_ref, o_ref):
    t = jnp.maximum(agg_ref[...], 0.0)                              # relu (f32)
    trans = jnp.dot(t.astype(jnp.bfloat16), wa_ref[...],
                    preferred_element_type=jnp.float32) + ba_ref[...]
    x = trans + h_ref[...]
    # TODO(synk): dropout = identity (eval mode).
    # nn.LayerNorm(out_dim), eps=1e-5 (torch default) -- f32 math.
    mu = jnp.mean(x, axis=-1, keepdims=True)
    var = jnp.mean(jnp.square(x - mu), axis=-1, keepdims=True)
    xn = (x - mu) * jax.lax.rsqrt(var + 1e-5) * g1_ref[...] + be1_ref[...]
    # PositionwiseFeedForward: w2(relu(w1(LayerNorm(xn, eps=1e-6)))) + xn
    mu2 = jnp.mean(xn, axis=-1, keepdims=True)
    var2 = jnp.mean(jnp.square(xn - mu2), axis=-1, keepdims=True)
    y = (xn - mu2) * jax.lax.rsqrt(var2 + 1e-6) * g2_ref[...] + be2_ref[...]
    inter = jnp.maximum(
        jnp.dot(y.astype(jnp.bfloat16), w1_ref[...],
                preferred_element_type=jnp.float32) + bf1_ref[...], 0.0)
    out = jnp.dot(inter.astype(jnp.bfloat16), w2_ref[...],
                  preferred_element_type=jnp.float32) + bf2_ref[...]
    o_ref[...] = (out + xn).astype(o_ref.dtype)


def _post_ffd(agg, h, wa, ba, g1, be1, g2, be2, w1, b1, w2, b2, vmem_limit):
    n_pad, d = h.shape
    d_ff = w1.shape[1]
    tn = _row_tile(n_pad)
    grid = (n_pad // tn,)

    def row(shape):
        return pl.BlockSpec(shape, lambda i: (i, 0))

    def res(shape):
        return pl.BlockSpec(shape, lambda i: (0, 0))

    return pl.pallas_call(
        _post_ffd_kernel,
        out_shape=jax.ShapeDtypeStruct((n_pad, d), jnp.float32),
        grid_spec=pltpu.PrefetchScalarGridSpec(
            num_scalar_prefetch=0,
            grid=grid,
            in_specs=[row((tn, d)), row((tn, d)),
                      res((d, d)), res((1, d)),
                      res((1, d)), res((1, d)), res((1, d)), res((1, d)),
                      res((d, d_ff)), res((1, d_ff)),
                      res((d_ff, d)), res((1, d))],
            out_specs=pl.BlockSpec((tn, d), lambda i: (i, 0)),
        ),
        compiler_params=pltpu.CompilerParams(
            dimension_semantics=("parallel",),
            vmem_limit_bytes=vmem_limit),
    )(agg, h, wa, ba, g1, be1, g2, be2, w1, b1, w2, b2)


# ----------------------------------------------------------------------------
# Full forward pass (JAX glue: padding, relation grouping, parameter prep).
# ----------------------------------------------------------------------------
def hgt_ffd_block_forward(params, h_dict, adj_dict, node_dict, edge_dict,
                          n_heads, out_dim):
    d_k = out_dim // n_heads
    sqrt_dk = math.sqrt(d_k)
    vmem_limit = _vmem_limit_bytes()

    n_real = {nt: h_dict[nt].shape[0] for nt in node_dict}
    n_pad = {nt: _padded_rows(n_real[nt]) for nt in node_dict}

    # Step 1: per-type K/Q/V projections (lane-dense bf16 outputs, row-tiled grid).
    kqv = {}
    for ntype, nid in node_dict.items():
        x = _pad_rows(h_dict[ntype], n_pad[ntype]).astype(jnp.bfloat16)
        k, q, v = _kqv(x,
                       params["wk"][nid].astype(jnp.bfloat16),
                       params["wq"][nid].astype(jnp.bfloat16),
                       params["wv"][nid].astype(jnp.bfloat16),
                       params["bk"][nid], params["bq"][nid], params["bv"][nid],
                       out_dim, vmem_limit)
        kqv[ntype] = (k, q, v)

    # Step 2: one fused flash-style relation kernel per destination type
    #         (relation axis inside the grid; cross_reducer='sum' in-kernel).
    rel_by_dst = {nt: [] for nt in node_dict}
    for (srctype, etype, dsttype), e_id in edge_dict.items():
        rel_by_dst[dsttype].append((srctype, etype, e_id))

    agg = {}
    for dsttype in node_dict:
        rels = rel_by_dst[dsttype]
        nd_p = n_pad[dsttype]
        if not rels:
            agg[dsttype] = jnp.zeros((nd_p, out_dim), jnp.float32)
            continue
        ns_max = max(n_pad[src] for src, _, _ in rels)
        k_list, v_list, att_list, msg_list, adj_list = [], [], [], [], []
        for srctype, etype, e_id in rels:
            k_src, _, v_src = kqv[srctype]
            k_list.append(_pad_rows(k_src, ns_max))
            v_list.append(_pad_rows(v_src, ns_max))
            scale = params["relation_pri"][e_id] / sqrt_dk                  # (H,)
            att = params["relation_att"][e_id] * scale[:, None, None]       # fold scale
            att_list.append(_block_diag(att).astype(jnp.bfloat16))
            msg_list.append(_block_diag(params["relation_msg"][e_id]).astype(jnp.bfloat16))
            adj = adj_dict[(srctype, etype, dsttype)].astype(jnp.int8)      # (Nd, Ns) 0/1
            adj = jnp.pad(adj, ((0, nd_p - adj.shape[0]),
                                (0, ns_max - adj.shape[1])))
            adj_list.append(adj)
        q_dst = kqv[dsttype][1]
        agg[dsttype] = _relation_attn_group(
            q_dst, jnp.stack(k_list), jnp.stack(v_list),
            jnp.stack(att_list), jnp.stack(msg_list), jnp.stack(adj_list),
            n_heads, d_k, vmem_limit)

    # Step 3: target-specific aggregation + LayerNorm + FFN (row-tiled grid).
    new_h = {}
    for ntype, nid in node_dict.items():
        np_ = n_pad[ntype]
        h_pad = _pad_rows(h_dict[ntype], np_)
        out = _post_ffd(agg[ntype], h_pad,
                        params["wa"][nid].astype(jnp.bfloat16), params["ba"][nid],
                        params["ln_g"][nid], params["ln_b"][nid],
                        params["ffn_ln_g"][nid], params["ffn_ln_b"][nid],
                        params["w1"][nid].astype(jnp.bfloat16), params["b1"][nid],
                        params["w2"][nid].astype(jnp.bfloat16), params["b2"][nid],
                        vmem_limit)
        new_h[ntype] = out[:n_real[ntype]]
    return new_h


# ----------------------------------------------------------------------------
# Deterministic parameter init (mirrors the module's __init__ shapes).
# ----------------------------------------------------------------------------
def init_params(key, node_dict, edge_dict, in_dim, out_dim, d_ff, n_heads):
    num_types = len(node_dict)
    num_rel = len(edge_dict)
    d_k = out_dim // n_heads

    def linear(k, din, dout):
        kw, kb = jax.random.split(k)
        bound = 1.0 / math.sqrt(din)
        w = jax.random.uniform(kw, (din, dout), jnp.float32, -bound, bound)
        b = jax.random.uniform(kb, (1, dout), jnp.float32, -bound, bound)
        return w, b

    params = {name: [] for name in
              ["wk", "bk", "wq", "bq", "wv", "bv", "wa", "ba",
               "ln_g", "ln_b", "w1", "b1", "w2", "b2", "ffn_ln_g", "ffn_ln_b"]}

    keys = jax.random.split(key, num_types * 6 + 2)
    idx = 0
    for _ in range(num_types):
        wk, bk = linear(keys[idx], in_dim, out_dim); idx += 1
        wq, bq = linear(keys[idx], in_dim, out_dim); idx += 1
        wv, bv = linear(keys[idx], in_dim, out_dim); idx += 1
        wa, ba = linear(keys[idx], out_dim, out_dim); idx += 1
        w1, b1 = linear(keys[idx], out_dim, d_ff); idx += 1
        w2, b2 = linear(keys[idx], d_ff, out_dim); idx += 1
        params["wk"].append(wk); params["bk"].append(bk)
        params["wq"].append(wq); params["bq"].append(bq)
        params["wv"].append(wv); params["bv"].append(bv)
        params["wa"].append(wa); params["ba"].append(ba)
        params["w1"].append(w1); params["b1"].append(b1)
        params["w2"].append(w2); params["b2"].append(b2)
        params["ln_g"].append(jnp.ones((1, out_dim), jnp.float32))
        params["ln_b"].append(jnp.zeros((1, out_dim), jnp.float32))
        params["ffn_ln_g"].append(jnp.ones((1, out_dim), jnp.float32))
        params["ffn_ln_b"].append(jnp.zeros((1, out_dim), jnp.float32))

    xavier_bound = math.sqrt(6.0 / (d_k + d_k))
    params["relation_pri"] = jnp.ones((num_rel, n_heads), jnp.float32)
    params["relation_att"] = jax.random.uniform(
        keys[idx], (num_rel, n_heads, d_k, d_k), jnp.float32,
        -xavier_bound, xavier_bound); idx += 1
    params["relation_msg"] = jax.random.uniform(
        keys[idx], (num_rel, n_heads, d_k, d_k), jnp.float32,
        -xavier_bound, xavier_bound); idx += 1
    return params


if __name__ == "__main__":
    key = jax.random.PRNGKey(0)

    # small heterogeneous graph: 2 node types, 3 canonical edge types
    node_dict = {"author": 0, "paper": 1}
    edge_dict = {("author", "writes", "paper"): 0,
                 ("paper", "cited_by", "author"): 1,
                 ("author", "collab", "author"): 2}

    in_dim = 32        # must equal out_dim for the residual in the reference
    out_dim = 32
    d_ff = 64
    n_heads = 2
    num_nodes = {"author": 8, "paper": 8}

    kp, kh0, kh1, ka0, ka1, ka2 = jax.random.split(key, 6)
    params = init_params(kp, node_dict, edge_dict, in_dim, out_dim, d_ff, n_heads)

    h = {"author": jax.random.normal(kh0, (num_nodes["author"], in_dim), jnp.float32),
         "paper": jax.random.normal(kh1, (num_nodes["paper"], in_dim), jnp.float32)}

    def rand_adj(k, n_dst, n_src):
        return (jax.random.uniform(k, (n_dst, n_src)) < 0.5).astype(jnp.float32)

    adj = {("author", "writes", "paper"): rand_adj(ka0, num_nodes["paper"], num_nodes["author"]),
           ("paper", "cited_by", "author"): rand_adj(ka1, num_nodes["author"], num_nodes["paper"]),
           ("author", "collab", "author"): rand_adj(ka2, num_nodes["author"], num_nodes["author"])}

    new_h = hgt_ffd_block_forward(params, h, adj, node_dict, edge_dict,
                                  n_heads, out_dim)
    jax.block_until_ready(new_h)

    for nt in node_dict:
        assert new_h[nt].shape == (num_nodes[nt], out_dim)
        assert bool(jnp.all(jnp.isfinite(new_h[nt])))
    print("KERNEL_OK")
</pallas_src>

<mosaic_0001>
module attributes {stable_mosaic.version = 11 : i64} {
  func.func @_kqv_kernel(%arg0: i32, %arg1: memref<8x32xbf16, #tpu.memory_space<vmem>>, %arg2: memref<32x32xbf16, #tpu.memory_space<vmem>>, %arg3: memref<32x32xbf16, #tpu.memory_space<vmem>>, %arg4: memref<32x32xbf16, #tpu.memory_space<vmem>>, %arg5: memref<1x32xf32, #tpu.memory_space<vmem>>, %arg6: memref<1x32xf32, #tpu.memory_space<vmem>>, %arg7: memref<1x32xf32, #tpu.memory_space<vmem>>, %arg8: memref<8x32xbf16, #tpu.memory_space<vmem>>, %arg9: memref<8x32xbf16, #tpu.memory_space<vmem>>, %arg10: memref<8x32xbf16, #tpu.memory_space<vmem>>) attributes {dimension_semantics = [#tpu.dimension_semantics<parallel>], iteration_bounds = array<i64: 1>, scalar_prefetch = 0 : i64, scratch_operands = 0 : i64, tpu.core_type = #tpu.core_type<tc>, window_params = [{transform_indices = @transform_0, window_bounds = array<i64: 8, 32>}, {pipeline_mode = #tpu.pipeline_mode<synchronous>, transform_indices = @transform_1, window_bounds = array<i64: 32, 32>}, {pipeline_mode = #tpu.pipeline_mode<synchronous>, transform_indices = @transform_2, window_bounds = array<i64: 32, 32>}, {pipeline_mode = #tpu.pipeline_mode<synchronous>, transform_indices = @transform_3, window_bounds = array<i64: 32, 32>}, {pipeline_mode = #tpu.pipeline_mode<synchronous>, transform_indices = @transform_4, window_bounds = array<i64: 1, 32>}, {pipeline_mode = #tpu.pipeline_mode<synchronous>, transform_indices = @transform_5, window_bounds = array<i64: 1, 32>}, {pipeline_mode = #tpu.pipeline_mode<synchronous>, transform_indices = @transform_6, window_bounds = array<i64: 1, 32>}, {transform_indices = @transform_7, window_bounds = array<i64: 8, 32>}, {transform_indices = @transform_8, window_bounds = array<i64: 8, 32>}, {transform_indices = @transform_9, window_bounds = array<i64: 8, 32>}]} {
    %c0 = arith.constant 0 : index
    %c0_0 = arith.constant 0 : index
    %0 = vector.load %arg1[%c0, %c0_0] : memref<8x32xbf16, #tpu.memory_space<vmem>>, vector<8x32xbf16>
    %c0_1 = arith.constant 0 : index
    %c0_2 = arith.constant 0 : index
    %1 = vector.load %arg2[%c0_1, %c0_2] : memref<32x32xbf16, #tpu.memory_space<vmem>>, vector<32x32xbf16>
    %cst = arith.constant dense<0.000000e+00> : vector<8x32xf32>
    %2 = tpu.matmul %0, %1, %cst {dimension_numbers = #tpu.dot_dimension_numbers<[1], [0], [0], [1], [0, 0, 1, 1], [], []>} : vector<8x32xbf16>, vector<32x32xbf16>, vector<8x32xf32> -> vector<8x32xf32>
    %c0_3 = arith.constant 0 : index
    %c0_4 = arith.constant 0 : index
    %3 = vector.load %arg5[%c0_3, %c0_4] : memref<1x32xf32, #tpu.memory_space<vmem>>, vector<1x32xf32>
    %4 = vector.broadcast %3 : vector<1x32xf32> to vector<8x32xf32>
    %5 = arith.addf %2, %4 : vector<8x32xf32>
    %6 = arith.truncf %5 : vector<8x32xf32> to vector<8x32xbf16>
    %c0_5 = arith.constant 0 : index
    %c0_6 = arith.constant 0 : index
    %7 = vector.load %arg8[%c0_5, %c0_6] : memref<8x32xbf16, #tpu.memory_space<vmem>>, vector<8x32xbf16>
    tpu.vector_store %arg8[%c0_5, %c0_6], %6 {strides = array<i32>} : memref<8x32xbf16, #tpu.memory_space<vmem>>, vector<8x32xbf16>,
    %c0_7 = arith.constant 0 : index
    %c0_8 = arith.constant 0 : index
    %8 = vector.load %arg3[%c0_7, %c0_8] : memref<32x32xbf16, #tpu.memory_space<vmem>>, vector<32x32xbf16>
    %cst_9 = arith.constant dense<0.000000e+00> : vector<8x32xf32>
    %9 = tpu.matmul %0, %8, %cst_9 {dimension_numbers = #tpu.dot_dimension_numbers<[1], [0], [0], [1], [0, 0, 1, 1], [], []>} : vector<8x32xbf16>, vector<32x32xbf16>, vector<8x32xf32> -> vector<8x32xf32>
    %c0_10 = arith.constant 0 : index
    %c0_11 = arith.constant 0 : index
    %10 = vector.load %arg6[%c0_10, %c0_11] : memref<1x32xf32, #tpu.memory_space<vmem>>, vector<1x32xf32>
    %11 = vector.broadcast %10 : vector<1x32xf32> to vector<8x32xf32>
    %12 = arith.addf %9, %11 : vector<8x32xf32>
    %13 = arith.truncf %12 : vector<8x32xf32> to vector<8x32xbf16>
    %c0_12 = arith.constant 0 : index
    %c0_13 = arith.constant 0 : index
    %14 = vector.load %arg9[%c0_12, %c0_13] : memref<8x32xbf16, #tpu.memory_space<vmem>>, vector<8x32xbf16>
    tpu.vector_store %arg9[%c0_12, %c0_13], %13 {strides = array<i32>} : memref<8x32xbf16, #tpu.memory_space<vmem>>, vector<8x32xbf16>,
    %c0_14 = arith.constant 0 : index
    %c0_15 = arith.constant 0 : index
    %15 = vector.load %arg4[%c0_14, %c0_15] : memref<32x32xbf16, #tpu.memory_space<vmem>>, vector<32x32xbf16>
    %cst_16 = arith.constant dense<0.000000e+00> : vector<8x32xf32>
    %16 = tpu.matmul %0, %15, %cst_16 {dimension_numbers = #tpu.dot_dimension_numbers<[1], [0], [0], [1], [0, 0, 1, 1], [], []>} : vector<8x32xbf16>, vector<32x32xbf16>, vector<8x32xf32> -> vector<8x32xf32>
    %c0_17 = arith.constant 0 : index
    %c0_18 = arith.constant 0 : index
    %17 = vector.load %arg7[%c0_17, %c0_18] : memref<1x32xf32, #tpu.memory_space<vmem>>, vector<1x32xf32>
    %18 = vector.broadcast %17 : vector<1x32xf32> to vector<8x32xf32>
    %19 = arith.addf %16, %18 : vector<8x32xf32>
    %20 = arith.truncf %19 : vector<8x32xf32> to vector<8x32xbf16>
    %c0_19 = arith.constant 0 : index
    %c0_20 = arith.constant 0 : index
    %21 = vector.load %arg10[%c0_19, %c0_20] : memref<8x32xbf16, #tpu.memory_space<vmem>>, vector<8x32xbf16>
    tpu.vector_store %arg10[%c0_19, %c0_20], %20 {strides = array<i32>} : memref<8x32xbf16, #tpu.memory_space<vmem>>, vector<8x32xbf16>,
    return
  }
  func.func @transform_0(%arg0: i32) -> (i32, i32) {
    %c0_i32 = arith.constant 0 : i32
    %c0_i32_0 = arith.constant 0 : i32
    return %arg0, %c0_i32 : i32, i32
  }
  func.func @transform_1(%arg0: i32) -> (i32, i32) {
    %c0_i32 = arith.constant 0 : i32
    %c0_i32_0 = arith.constant 0 : i32
    %c0_i32_1 = arith.constant 0 : i32
    return %c0_i32, %c0_i32_0 : i32, i32
  }
  func.func @transform_2(%arg0: i32) -> (i32, i32) {
    %c0_i32 = arith.constant 0 : i32
    %c0_i32_0 = arith.constant 0 : i32
    %c0_i32_1 = arith.constant 0 : i32
    return %c0_i32, %c0_i32_0 : i32, i32
  }
  func.func @transform_3(%arg0: i32) -> (i32, i32) {
    %c0_i32 = arith.constant 0 : i32
    %c0_i32_0 = arith.constant 0 : i32
    %c0_i32_1 = arith.constant 0 : i32
    return %c0_i32, %c0_i32_0 : i32, i32
  }
  func.func @transform_4(%arg0: i32) -> (i32, i32) {
    %c0_i32 = arith.constant 0 : i32
    %c0_i32_0 = arith.constant 0 : i32
    %c0_i32_1 = arith.constant 0 : i32
    return %c0_i32, %c0_i32_0 : i32, i32
  }
  func.func @transform_5(%arg0: i32) -> (i32, i32) {
    %c0_i32 = arith.constant 0 : i32
    %c0_i32_0 = arith.constant 0 : i32
    %c0_i32_1 = arith.constant 0 : i32
    return %c0_i32, %c0_i32_0 : i32, i32
  }
  func.func @transform_6(%arg0: i32) -> (i32, i32) {
    %c0_i32 = arith.constant 0 : i32
    %c0_i32_0 = arith.constant 0 : i32
    %c0_i32_1 = arith.constant 0 : i32
    return %c0_i32, %c0_i32_0 : i32, i32
  }
  func.func @transform_7(%arg0: i32) -> (i32, i32) {
    %c0_i32 = arith.constant 0 : i32
    %c0_i32_0 = arith.constant 0 : i32
    return %arg0, %c0_i32 : i32, i32
  }
  func.func @transform_8(%arg0: i32) -> (i32, i32) {
    %c0_i32 = arith.constant 0 : i32
    %c0_i32_0 = arith.constant 0 : i32
    return %arg0, %c0_i32 : i32, i32
  }
  func.func @transform_9(%arg0: i32) -> (i32, i32) {
    %c0_i32 = arith.constant 0 : i32
    %c0_i32_0 = arith.constant 0 : i32
    return %arg0, %c0_i32 : i32, i32
  }
}

</mosaic_0001>

<llo_original>
// kernel: tpu_custom_call.1
$region0: #{tpu_custom_call.1}
  #allocation0 [shape = 'u32[]', space=smem, size = 0x4, offset = 0x4, fixed_abs, tag = 'smem constant byte address 0x4 - core index']
  #allocation1 [shape = 'u32[144,128]{1,0:T(1,128)}', space=vmem, size = 0x12000, scoped, tag = 'internal scratch']
  %s0 = inlined_call_operand.hbm [shape: bf16[8,32], index: 0, kind: input, shape index: {}]
  %s1 = inlined_call_operand.hbm [shape: bf16[32,32], index: 1, kind: input, shape index: {}]
  %s2 = inlined_call_operand.hbm [shape: bf16[32,32], index: 2, kind: input, shape index: {}]
  %s3 = inlined_call_operand.hbm [shape: bf16[32,32], index: 3, kind: input, shape index: {}]
  %s4 = inlined_call_operand.vmem [shape: f32[1,32], index: 4, kind: input, shape index: {}]
  %s5 = inlined_call_operand.vmem [shape: f32[1,32], index: 5, kind: input, shape index: {}]
  %s6 = inlined_call_operand.vmem [shape: f32[1,32], index: 6, kind: input, shape index: {}]
  %s7 = inlined_call_operand.hbm [shape: bf16[8,32], index: 7, kind: output, shape index: {0}]
  %s8 = inlined_call_operand.hbm [shape: bf16[8,32], index: 8, kind: output, shape index: {1}]
  %s9 = inlined_call_operand.hbm [shape: bf16[8,32], index: 9, kind: output, shape index: {2}]
  %10 = xla_tuple %s7, %s8, %s9
  %s11 = sld [smem:[#allocation0]]
  $region70: #{tpu_custom_call.1} parent=0
    _
  %s13 = ssub.s32 1, %s11
  %s14 = scalar_select 0, %s13, %s11
  $region1: #{tpu_custom_call.1} parent=0
    #allocation2 [shape = 'u8[2048]{0}', space=vmem, size = 0x800, scoped, tag = 'input window, operand 0, single buffered']
    #allocation3 [shape = 's32[1]{0}', space=sflag, size = 0x4, scoped, tag = 'scoped memory for tpu_custom_call.1']
    #allocation4 [shape = 's32[1]{0}', space=sflag, size = 0x4, scoped, tag = 'scoped memory for tpu_custom_call.1']
    #allocation5 [shape = 'u8[8192]{0}', space=vmem, size = 0x2000, scoped, tag = 'input window, operand 1, single buffered']
    #allocation6 [shape = 's32[1]{0}', space=sflag, size = 0x4, scoped, tag = 'scoped memory for tpu_custom_call.1']
    #allocation7 [shape = 'u8[8192]{0}', space=vmem, size = 0x2000, scoped, tag = 'input window, operand 2, single buffered']
    #allocation8 [shape = 'u8[8192]{0}', space=vmem, size = 0x2000, scoped, tag = 'input window, operand 3, single buffered']
    #allocation9 [shape = 's32[1]{0}', space=sflag, size = 0x4, scoped, tag = 'scoped memory for tpu_custom_call.1']
    #allocation10 [shape = 'u8[2048]{0}', space=vmem, size = 0x800, scoped, tag = 'output window, operand 0, single buffered']
    #allocation11 [shape = 'u8[2048]{0}', space=vmem, size = 0x800, scoped, tag = 'output window, operand 1, single buffered']
    #allocation12 [shape = 's32[1]{0}', space=sflag, size = 0x4, scoped, tag = 'scoped memory for tpu_custom_call.1']
    #allocation13 [shape = 'u8[2048]{0}', space=vmem, size = 0x800, scoped, tag = 'output window, operand 2, single buffered']
    %15 = vsyncpa [#allocation3], 0
    %16 = vsyncpa [#allocation6], 0
    %17 = vsyncpa [#allocation9], 0
    %18 = vsyncpa [#allocation4], 0
    %19 = vsyncpa [#allocation12], 0
    // Predicated region
    $region2: #{tpu_custom_call.1} parent=1 // pred_check
      _
    $region3: #{tpu_custom_call.1} parent=1 // pred_check_branch
      %21 = sbr.rel (0) target = $region5
    $region4: #{tpu_custom_call.1} parent=1 // pred_region
      %s23 = ssub.s32 64, 64
      %24 = vsyncadd [#allocation3], %s23
      %s26 = sshll.u32 [#allocation2], 4
      %s27 = int_to_ptr.vmem [resolvable:$true] %s26
      %29 = dma.hbm_to_vmem [thread:$0]  %s0, 64, %s27, [#allocation3]
    $region5: #{tpu_custom_call.1} parent=1 // pred_fallthru
      _
    // Predicated region
    $region6: #{tpu_custom_call.1} parent=1 // pred_check
      _
    $region7: #{tpu_custom_call.1} parent=1 // pred_check_branch
      %31 = sbr.rel (0) target = $region9
    $region8: #{tpu_custom_call.1} parent=1 // pred_region
      %s33 = ssub.s32 256, 256
      %34 = vsyncadd [#allocation6], %s33
      %s35 = sshll.u32 [#allocation5], 4
      %s36 = int_to_ptr.vmem [resolvable:$true] %s35
      %41 = dma.hbm_to_vmem [thread:$0]  %s1, 256, %s36, [#allocation6], 64, 64, 4
    $region9: #{tpu_custom_call.1} parent=1 // pred_fallthru
      _
    // Predicated region
    $region10: #{tpu_custom_call.1} parent=1 // pred_check
      _
    $region11: #{tpu_custom_call.1} parent=1 // pred_check_branch
      %43 = sbr.rel (0) target = $region13
    $region12: #{tpu_custom_call.1} parent=1 // pred_region
      %s45 = ssub.s32 256, 256
      %46 = vsyncadd [#allocation6], %s45
      %s47 = sshll.u32 [#allocation7], 4
      %s48 = int_to_ptr.vmem [resolvable:$true] %s47
      %53 = dma.hbm_to_vmem [thread:$0]  %s2, 256, %s48, [#allocation6], 64, 64, 4
    $region13: #{tpu_custom_call.1} parent=1 // pred_fallthru
      _
    // Predicated region
    $region14: #{tpu_custom_call.1} parent=1 // pred_check
      _
    $region15: #{tpu_custom_call.1} parent=1 // pred_check_branch
      %55 = sbr.rel (0) target = $region17
    $region16: #{tpu_custom_call.1} parent=1 // pred_region
      %s57 = ssub.s32 256, 256
      %58 = vsyncadd [#allocation9], %s57
      %s59 = sshll.u32 [#allocation8], 4
      %s60 = int_to_ptr.vmem [resolvable:$true] %s59
      %65 = dma.hbm_to_vmem [thread:$0]  %s3, 256, %s60, [#allocation9], 64, 64, 4
    $region17: #{tpu_custom_call.1} parent=1 // pred_fallthru
      _
    // Predicated region
    $region18: #{tpu_custom_call.1} parent=1 // pred_check
      _
    $region19: #{tpu_custom_call.1} parent=1 // pred_check_branch
      %67 = sbr.rel (0) target = $region21
    $region20: #{tpu_custom_call.1} parent=1 // pred_region
      _
    $region21: #{tpu_custom_call.1} parent=1 // pred_fallthru
      _
    // Predicated region
    $region22: #{tpu_custom_call.1} parent=1 // pred_check
      _
    $region23: #{tpu_custom_call.1} parent=1 // pred_check_branch
      %69 = sbr.rel (0) target = $region25
    $region24: #{tpu_custom_call.1} parent=1 // pred_region
      _
    $region25: #{tpu_custom_call.1} parent=1 // pred_fallthru
      _
    // Predicated region
    $region26: #{tpu_custom_call.1} parent=1 // pred_check
      _
    $region27: #{tpu_custom_call.1} parent=1 // pred_check_branch
      %71 = sbr.rel (0) target = $region29
    $region28: #{tpu_custom_call.1} parent=1 // pred_region
      _
    $region29: #{tpu_custom_call.1} parent=1 // pred_fallthru
      _
    // Predicated region
    $region30: #{tpu_custom_call.1} parent=1 // pred_check
      _
    $region31: #{tpu_custom_call.1} parent=1 // pred_check_branch
      %73 = sbr.rel (0) target = $region33
    $region32: #{tpu_custom_call.1} parent=1 // pred_region
      %74 = dma.done [#allocation3], 64
    $region33: #{tpu_custom_call.1} parent=1 // pred_fallthru
      _
    // Predicated region
    $region34: #{tpu_custom_call.1} parent=1 // pred_check
      _
    $region35: #{tpu_custom_call.1} parent=1 // pred_check_branch
      %76 = sbr.rel (0) target = $region37
    $region36: #{tpu_custom_call.1} parent=1 // pred_region
      %77 = dma.done [#allocation6], 256
    $region37: #{tpu_custom_call.1} parent=1 // pred_fallthru
      _
    // Predicated region
    $region38: #{tpu_custom_call.1} parent=1 // pred_check
      _
    $region39: #{tpu_custom_call.1} parent=1 // pred_check_branch
      %79 = sbr.rel (0) target = $region41
    $region40: #{tpu_custom_call.1} parent=1 // pred_region
      %80 = dma.done [#allocation6], 256
    $region41: #{tpu_custom_call.1} parent=1 // pred_fallthru
      _
    // Predicated region
    $region42: #{tpu_custom_call.1} parent=1 // pred_check
      _
    $region43: #{tpu_custom_call.1} parent=1 // pred_check_branch
      %82 = sbr.rel (0) target = $region45
    $region44: #{tpu_custom_call.1} parent=1 // pred_region
      %83 = dma.done [#allocation9], 256
    $region45: #{tpu_custom_call.1} parent=1 // pred_fallthru
      _
    %v85 = vld [vmem:[#allocation2] sm:$0xf]
    %v86 = vld [vmem:[#allocation5] sm:$0xf]
    %v87 = vld [vmem:[#allocation5 + $0x4] sm:$0xf]
    %v88 = vld [vmem:[#allocation5 + $0x8] sm:$0xf]
    %v89 = vld [vmem:[#allocation5 + $0xc] sm:$0xf]
    %v90 = vld [vmem:[%s4] sm:$0x1]
    %v92 = vlaneseq
    %v93 = vshrl.u32 %v92, 7
    %v94 = vsub.s32 0, %v93
    %v95 = vrot.slane %v90, %v94
    %v101 = vunpack.c.l.b16 %v86
    %v102 = vunpack.c.l.b16 %v87
    %v103 = vunpack.c.l.b16 %v88
    %v104 = vunpack.c.l.b16 %v89
    %v105 = vpack.c.b16 %v102, %v101
    %v106 = vpack.c.b16 %v104, %v103
    %vm109 = vcmask 261120
    %v111 = vsel %vm109, %v85, 0
    %113 = vmatprep.subr.bf16.mxu0 0
    %114 = vmatpush1.bf16.msra.mxu0 %v105
    %115 = vmatprep.subr.bf16.mxu0 0
    %116 = vmatpush1.bf16.msra.mxu0 %v106
    %117 = vmatprep.subr.bf16.mxu0 0
    %118 = vmatpush1.bf16.msra.mxu0 0
    %119 = vmatprep.subr.bf16.mxu0 0
    %120 = vmatpush1.bf16.msra.mxu0 0
    %121 = vmatprep.subr.bf16.mxu0 0
    %122 = vmatpush1.bf16.msra.mxu0 0
    %123 = vmatprep.subr.bf16.mxu0 0
    %124 = vmatpush1.bf16.msra.mxu0 0
    %125 = vmatprep.subr.bf16.mxu0 0
    %126 = vmatpush1.bf16.msra.mxu0 0
    %127 = vmatprep.subr.bf16.mxu0 0
    %128 = vmatpush1.bf16.msra.mxu0 0
    %129 = vmatprep.subr.bf16.mxu0 0
    %130 = vmatpush1.bf16.msra.mxu0 0
    %131 = vmatprep.subr.bf16.mxu0 0
    %132 = vmatpush1.bf16.msra.mxu0 0
    %133 = vmatprep.subr.bf16.mxu0 0
    %134 = vmatpush1.bf16.msra.mxu0 0
    %135 = vmatprep.subr.bf16.mxu0 0
    %136 = vmatpush1.bf16.msra.mxu0 0
    %137 = vmatprep.subr.bf16.mxu0 0
    %138 = vmatpush1.bf16.msra.mxu0 0
    %139 = vmatprep.subr.bf16.mxu0 0
    %140 = vmatpush1.bf16.msra.mxu0 0
    %141 = vmatprep.subr.bf16.mxu0 0
    %142 = vmatpush1.bf16.msra.mxu0 0
    %143 = vmatprep.subr.bf16.mxu0 0
    %144 = vmatpush1.bf16.msra.mxu0 0
    %145 = vmatprep.mubr.bf16.mxu0 0
    %146 = vmatmul.mubr.bf16.gmra.mrb[0].mxu0 %v111
    %v147 = vpop.f32.mrb[0].mxu0
    %v148 = vadd.f32 %v95, %v147
    %v149 = vpop.f32.mrb[0].mxu0
    %v150 = vpop.f32.mrb[0].mxu0
    %v151 = vpop.f32.mrb[0].mxu0
    %152 = vdwg.mxu0
    %v153 = vpack.c.bf16 %v148, %v148
    %vm154 = vcmask 257024
    %155 = vst.msk [vmem:[#allocation10] sm:$0xf] %vm154, %v153
    %v156 = vld [vmem:[#allocation7] sm:$0xf]
    %v157 = vld [vmem:[#allocation7 + $0x4] sm:$0xf]
    %v158 = vld [vmem:[#allocation7 + $0x8] sm:$0xf]
    %v159 = vld [vmem:[#allocation7 + $0xc] sm:$0xf]
    %v160 = vld [vmem:[%s5] sm:$0x1]
    %v162 = vlaneseq
    %v163 = vshrl.u32 %v162, 7
    %v164 = vsub.s32 0, %v163
    %v165 = vrot.slane %v160, %v164
    %v171 = vunpack.c.l.b16 %v156
    %v172 = vunpack.c.l.b16 %v157
    %v173 = vunpack.c.l.b16 %v158
    %v174 = vunpack.c.l.b16 %v159
    %v175 = vpack.c.b16 %v172, %v171
    %v176 = vpack.c.b16 %v174, %v173
    %179 = vmatprep.subr.bf16.mxu0 0
    %180 = vmatpush1.bf16.msra.mxu0 %v175
    %181 = vmatprep.subr.bf16.mxu0 0
    %182 = vmatpush1.bf16.msra.mxu0 %v176
    %183 = vmatprep.subr.bf16.mxu0 0
    %184 = vmatpush1.bf16.msra.mxu0 0
    %185 = vmatprep.subr.bf16.mxu0 0
    %186 = vmatpush1.bf16.msra.mxu0 0
    %187 = vmatprep.subr.bf16.mxu0 0
    %188 = vmatpush1.bf16.msra.mxu0 0
    %189 = vmatprep.subr.bf16.mxu0 0
    %190 = vmatpush1.bf16.msra.mxu0 0
    %191 = vmatprep.subr.bf16.mxu0 0
    %192 = vmatpush1.bf16.msra.mxu0 0
    %193 = vmatprep.subr.bf16.mxu0 0
    %194 = vmatpush1.bf16.msra.mxu0 0
    %195 = vmatprep.subr.bf16.mxu0 0
    %196 = vmatpush1.bf16.msra.mxu0 0
    %197 = vmatprep.subr.bf16.mxu0 0
    %198 = vmatpush1.bf16.msra.mxu0 0
    %199 = vmatprep.subr.bf16.mxu0 0
    %200 = vmatpush1.bf16.msra.mxu0 0
    %201 = vmatprep.subr.bf16.mxu0 0
    %202 = vmatpush1.bf16.msra.mxu0 0
    %203 = vmatprep.subr.bf16.mxu0 0
    %204 = vmatpush1.bf16.msra.mxu0 0
    %205 = vmatprep.subr.bf16.mxu0 0
    %206 = vmatpush1.bf16.msra.mxu0 0
    %207 = vmatprep.subr.bf16.mxu0 0
    %208 = vmatpush1.bf16.msra.mxu0 0
    %209 = vmatprep.subr.bf16.mxu0 0
    %210 = vmatpush1.bf16.msra.mxu0 0
    %211 = vmatprep.mubr.bf16.mxu0 0
    %212 = vmatmul.mubr.bf16.gmra.mrb[0].mxu0 %v111
    %v213 = vpop.f32.mrb[0].mxu0
    %v214 = vadd.f32 %v165, %v213
    %v215 = vpop.f32.mrb[0].mxu0
    %v216 = vpop.f32.mrb[0].mxu0
    %v217 = vpop.f32.mrb[0].mxu0
    %218 = vdwg.mxu0
    %v219 = vpack.c.bf16 %v214, %v214
    %220 = vst.msk [vmem:[#allocation11] sm:$0xf] %vm154, %v219
    %v221 = vld [vmem:[#allocation8] sm:$0xf]
    %v222 = vld [vmem:[#allocation8 + $0x4] sm:$0xf]
    %v223 = vld [vmem:[#allocation8 + $0x8] sm:$0xf]
    %v224 = vld [vmem:[#allocation8 + $0xc] sm:$0xf]
    %v225 = vld [vmem:[%s6] sm:$0x1]
    %v227 = vlaneseq
    %v228 = vshrl.u32 %v227, 7
    %v229 = vsub.s32 0, %v228
    %v230 = vrot.slane %v225, %v229
    %v236 = vunpack.c.l.b16 %v221
    %v237 = vunpack.c.l.b16 %v222
    %v238 = vunpack.c.l.b16 %v223
    %v239 = vunpack.c.l.b16 %v224
    %v240 = vpack.c.b16 %v237, %v236
    %v241 = vpack.c.b16 %v239, %v238
    %244 = vmatprep.subr.bf16.mxu0 0
    %245 = vmatpush1.bf16.msra.mxu0 %v240
    %246 = vmatprep.subr.bf16.mxu0 0
    %247 = vmatpush1.bf16.msra.mxu0 %v241
    %248 = vmatprep.subr.bf16.mxu0 0
    %249 = vmatpush1.bf16.msra.mxu0 0
    %250 = vmatprep.subr.bf16.mxu0 0
    %251 = vmatpush1.bf16.msra.mxu0 0
    %252 = vmatprep.subr.bf16.mxu0 0
    %253 = vmatpush1.bf16.msra.mxu0 0
    %254 = vmatprep.subr.bf16.mxu0 0
    %255 = vmatpush1.bf16.msra.mxu0 0
    %256 = vmatprep.subr.bf16.mxu0 0
    %257 = vmatpush1.bf16.msra.mxu0 0
    %258 = vmatprep.subr.bf16.mxu0 0
    %259 = vmatpush1.bf16.msra.mxu0 0
    %260 = vmatprep.subr.bf16.mxu0 0
    %261 = vmatpush1.bf16.msra.mxu0 0
    %262 = vmatprep.subr.bf16.mxu0 0
    %263 = vmatpush1.bf16.msra.mxu0 0
    %264 = vmatprep.subr.bf16.mxu0 0
    %265 = vmatpush1.bf16.msra.mxu0 0
    %266 = vmatprep.subr.bf16.mxu0 0
    %267 = vmatpush1.bf16.msra.mxu0 0
    %268 = vmatprep.subr.bf16.mxu0 0
    %269 = vmatpush1.bf16.msra.mxu0 0
    %270 = vmatprep.subr.bf16.mxu0 0
    %271 = vmatpush1.bf16.msra.mxu0 0
    %272 = vmatprep.subr.bf16.mxu0 0
    %273 = vmatpush1.bf16.msra.mxu0 0
    %274 = vmatprep.subr.bf16.mxu0 0
    %275 = vmatpush1.bf16.msra.mxu0 0
    %276 = vmatprep.mubr.bf16.mxu0 0
    %277 = vmatmul.mubr.bf16.gmra.mrb[0].mxu0 %v111
    %v278 = vpop.f32.mrb[0].mxu0
    %v279 = vadd.f32 %v230, %v278
    %v280 = vpop.f32.mrb[0].mxu0
    %v281 = vpop.f32.mrb[0].mxu0
    %v282 = vpop.f32.mrb[0].mxu0
    %283 = vdwg.mxu0
    %v284 = vpack.c.bf16 %v279, %v279
    %285 = vst.msk [vmem:[#allocation13] sm:$0xf] %vm154, %v284
    // Predicated region
    $region46: #{tpu_custom_call.1} parent=1 // pred_check
      _
    $region47: #{tpu_custom_call.1} parent=1 // pred_check_branch
      %287 = sbr.rel (0) target = $region49
    $region48: #{tpu_custom_call.1} parent=1 // pred_region
      %s289 = ssub.s32 64, 64
      %290 = vsyncadd [#allocation4], %s289
      %s292 = sshll.u32 [#allocation10], 4
      %s293 = int_to_ptr.vmem [resolvable:$true] %s292
      %295 = dma.vmem_to_hbm [thread:$0]  %s293, 64, %s7, [#allocation4]
    $region49: #{tpu_custom_call.1} parent=1 // pred_fallthru
      _
    // Predicated region
    $region50: #{tpu_custom_call.1} parent=1 // pred_check
      _
    $region51: #{tpu_custom_call.1} parent=1 // pred_check_branch
      %297 = sbr.rel (0) target = $region53
    $region52: #{tpu_custom_call.1} parent=1 // pred_region
      %s299 = ssub.s32 64, 64
      %300 = vsyncadd [#allocation12], %s299
      %s302 = sshll.u32 [#allocation11], 4
      %s303 = int_to_ptr.vmem [resolvable:$true] %s302
      %305 = dma.vmem_to_hbm [thread:$0]  %s303, 64, %s8, [#allocation12]
    $region53: #{tpu_custom_call.1} parent=1 // pred_fallthru
      _
    // Predicated region
    $region54: #{tpu_custom_call.1} parent=1 // pred_check
      _
    $region55: #{tpu_custom_call.1} parent=1 // pred_check_branch
      %307 = sbr.rel (0) target = $region57
    $region56: #{tpu_custom_call.1} parent=1 // pred_region
      %s309 = ssub.s32 64, 64
      %310 = vsyncadd [#allocation12], %s309
      %s312 = sshll.u32 [#allocation13], 4
      %s313 = int_to_ptr.vmem [resolvable:$true] %s312
      %315 = dma.vmem_to_hbm [thread:$0]  %s313, 64, %s9, [#allocation12]
    $region57: #{tpu_custom_call.1} parent=1 // pred_fallthru
      _
    // Predicated region
    $region58: #{tpu_custom_call.1} parent=1 // pred_check
      _
    $region59: #{tpu_custom_call.1} parent=1 // pred_check_branch
      %317 = sbr.rel (0) target = $region61
    $region60: #{tpu_custom_call.1} parent=1 // pred_region
      %318 = dma.done [#allocation4], 64
    $region61: #{tpu_custom_call.1} parent=1 // pred_fallthru
      _
    // Predicated region
    $region62: #{tpu_custom_call.1} parent=1 // pred_check
      _
    $region63: #{tpu_custom_call.1} parent=1 // pred_check_branch
      %320 = sbr.rel (0) target = $region65
    $region64: #{tpu_custom_call.1} parent=1 // pred_region
      %321 = dma.done [#allocation12], 64
    $region65: #{tpu_custom_call.1} parent=1 // pred_fallthru
      _
    // Predicated region
    $region66: #{tpu_custom_call.1} parent=1 // pred_check
      _
    $region67: #{tpu_custom_call.1} parent=1 // pred_check_branch
      %323 = sbr.rel (0) target = $region69
    $region68: #{tpu_custom_call.1} parent=1 // pred_region
      %324 = dma.done [#allocation12], 64
    $region69: #{tpu_custom_call.1} parent=1 // pred_fallthru
      _
    %325 = vsyncpa [#allocation3], 1
    %326 = vsyncpa [#allocation6], 1
    %327 = vsyncpa [#allocation9], 1
    %328 = vsyncpa [#allocation4], 1
    %329 = vsyncpa [#allocation12], 1

</llo_original>
